<compile_context>
chip_gen: v7x
topology: tpu7x:2x2x1
jax: 0.10.0
libtpu: 0.0.40
codegen_flags: <defaults>
</compile_context>

<pallas_src>
import functools
import math

import jax
import jax.numpy as jnp
from jax.experimental import pallas as pl
from jax.experimental.pallas import tpu as pltpu


# ----------------------------- small helpers (glue) -----------------------------

def check_degree_range(L):
    if isinstance(L, int):
        return (0, L)
    return (int(L[0]), int(L[1]))


def num_orders_in(L):
    l_min, l_max = L
    return (l_max + 1) ** 2 - l_min ** 2


def extract_in_degree(x, L_in, L):
    """Slice the order axis of x (spanning degrees L_in) down to degrees L."""
    if tuple(L_in) == tuple(L):
        return x
    assert L_in[0] <= L[0] <= L[1] <= L_in[1], "L must be contained in L_in"
    off = L[0] ** 2 - L_in[0] ** 2
    return jax.lax.slice_in_dim(x, off, off + num_orders_in(L), axis=1)


def _round_up(v, m):
    return ((v + m - 1) // m) * m


def _vmem_limit_bytes():
    """Generation-aware scoped-VMEM limit (v7x has only 64 MiB physical)."""
    try:
        cap = int(pltpu.get_tpu_info().vmem_capacity_bytes)
    except Exception:
        cap = 64 << 20          # conservative: assume v7x-sized VMEM
    return min(int(cap * 0.6), 48 << 20)


def _pick_row_tile(N, dt_size, per_row_bytes, resident_w_bytes, budget,
                   row_tile_cap=512):
    """Largest sublane-aligned row tile that fits VMEM, capped for pipelining."""
    sub = {4: 8, 2: 16, 1: 32}.get(dt_size, 8)      # dtype-specific sublane multiple
    avail = budget - resident_w_bytes
    if avail < per_row_bytes * sub:
        # TODO(synk): stream one degree's weight slab per grid step
        # (PrefetchScalarGridSpec) when the resident weight alone exceeds VMEM.
        avail = per_row_bytes * sub
    max_rows = max(sub, (avail // per_row_bytes) // sub * sub)
    rt = min(row_tile_cap, max_rows)
    if N > sub:
        # keep >= 2 grid steps when N allows (v7x megacore + DMA/compute overlap)
        rt = min(rt, _round_up(-(-N // 2), sub))
    else:
        rt = min(rt, _round_up(N, sub))
    return max(sub, rt)


# ---------------------------------- kernels --------------------------------------

def dw_linear_blockdiag_kernel(x_ref, w_ref, o_ref):
    # x_ref: (TN, Kp) row tile with orders flattened (lane-padded to 128-mult)
    # w_ref: (Kp, Pp) block-diagonal weight, resident in VMEM across all steps
    # o_ref: (TN, Pp) lane-dense output tile -> unmasked full-vreg stores
    o_ref[...] = jnp.dot(x_ref[...], w_ref[...],
                         preferred_element_type=jnp.float32).astype(o_ref.dtype)


def dw_linear_degreewise_kernel(x_ref, w_ref, o_ref, *, l_min, l_max, c_in, c_out):
    # Fallback for large channels: whole weight resident; each degree's weight tile
    # is read from VMEM once and reused for its 2l+1 orders; the 2l+1 results are
    # fused into one wide store per degree.
    for li, l in enumerate(range(l_min, l_max + 1)):
        w_l = w_ref[li]                                  # (C_in, C_out)
        off = l * l - l_min * l_min                      # first order of degree l
        n_ord = 2 * l + 1
        ys = [jnp.dot(x_ref[:, (off + j) * c_in:(off + j + 1) * c_in], w_l,
                      preferred_element_type=jnp.float32)
              for j in range(n_ord)]
        o_ref[:, off * c_out:(off + n_ord) * c_out] = (
            jnp.concatenate(ys, axis=-1).astype(o_ref.dtype))


# ---------------------------------- wrapper --------------------------------------

def dw_linear(x, weight, L, L_in=None, *, row_tile=None):
    """x: (N, M_in, C_in), weight: (L_len, C_in, C_out) -> (N, M, C_out)."""
    L = check_degree_range(L)
    L_in = check_degree_range(L_in) if L_in is not None else L
    x = extract_in_degree(x, L_in, L)

    N, M, C_in = x.shape
    L_len, C_in_w, C_out = weight.shape
    assert L_len == L[1] + 1 - L[0]
    assert C_in_w == C_in
    assert M == num_orders_in(L)

    dt_size = jnp.dtype(x.dtype).itemsize
    w_size = jnp.dtype(weight.dtype).itemsize
    vmem_limit = _vmem_limit_bytes()
    budget = vmem_limit - (2 << 20)          # headroom for compiler scratch

    K, P = M * C_in, M * C_out
    Kp, Pp = _round_up(K, 128), _round_up(P, 128)

    # Free row-major reshape: no transpose, no extra HBM pass.
    x2 = x.reshape(N, K)

    # Small-channel regime: one dense matmul per row tile against a block-diagonal
    # weight (zeros except the W[deg(m)] blocks).  The extra FLOPs are irrelevant
    # here (store/overhead bound), and the weight blowup is tiny.
    use_block_diag = (Kp <= 2048 and Pp <= 2048
                      and 2 * Kp * Pp * w_size <= budget // 2)

    if use_block_diag:
        deg = jnp.asarray([l - L[0] for l in range(L[0], L[1] + 1)
                           for _ in range(2 * l + 1)], dtype=jnp.int32)
        w_per_order = weight[deg]                                    # (M, C_in, C_out)
        eye = jnp.eye(M, dtype=weight.dtype)
        w_bd = jnp.einsum('mio,mn->mino', w_per_order, eye).reshape(K, P)
        w_bd = jnp.pad(w_bd, ((0, Kp - K), (0, Pp - P)))             # lane-dense pad
        if Kp > K:
            x2 = jnp.pad(x2, ((0, 0), (0, Kp - K)))

        resident_w = 2 * Kp * Pp * w_size        # conservative: double-buffered
        per_row = 2 * (Kp + Pp) * dt_size        # double-buffered in + out
        if row_tile is None:
            row_tile = _pick_row_tile(N, dt_size, per_row, resident_w, budget)

        pad = (-N) % row_tile
        if pad:
            x2 = jnp.pad(x2, ((0, pad), (0, 0)))
        Np = N + pad

        out2 = pl.pallas_call(
            dw_linear_blockdiag_kernel,
            out_shape=jax.ShapeDtypeStruct((Np, Pp), x.dtype),
            grid=(Np // row_tile,),
            in_specs=[
                pl.BlockSpec((row_tile, Kp), lambda i: (i, 0)),
                # Constant index_map: the weight is DMA'd once and stays resident.
                pl.BlockSpec((Kp, Pp), lambda i: (0, 0)),
            ],
            out_specs=pl.BlockSpec((row_tile, Pp), lambda i: (i, 0)),
            compiler_params=pltpu.CompilerParams(
                dimension_semantics=("parallel",),
                vmem_limit_bytes=vmem_limit),
            cost_estimate=pl.CostEstimate(
                flops=2 * Np * Kp * Pp,
                transcendentals=0,
                bytes_accessed=Np * Kp * dt_size + Kp * Pp * w_size
                               + Np * Pp * dt_size),
        )(x2, w_bd)

        out2 = out2[:N, :P]
        return out2.reshape(N, M, C_out)

    # ---------------- large-channel fallback (per-degree matmuls) -----------------
    resident_w = 2 * L_len * C_in * C_out * w_size
    per_row = 2 * (K + P) * dt_size
    if row_tile is None:
        row_tile = _pick_row_tile(N, dt_size, per_row, resident_w, budget)

    pad = (-N) % row_tile
    if pad:
        x2 = jnp.pad(x2, ((0, pad), (0, 0)))
    Np = N + pad

    kernel = functools.partial(dw_linear_degreewise_kernel,
                               l_min=L[0], l_max=L[1], c_in=C_in, c_out=C_out)
    out2 = pl.pallas_call(
        kernel,
        out_shape=jax.ShapeDtypeStruct((Np, P), x.dtype),
        grid=(Np // row_tile,),
        in_specs=[
            pl.BlockSpec((row_tile, K), lambda i: (i, 0)),
            pl.BlockSpec((L_len, C_in, C_out), lambda i: (0, 0, 0)),
        ],
        out_specs=pl.BlockSpec((row_tile, P), lambda i: (i, 0)),
        compiler_params=pltpu.CompilerParams(
            dimension_semantics=("parallel",),
            vmem_limit_bytes=vmem_limit),
        cost_estimate=pl.CostEstimate(
            flops=2 * Np * M * C_in * C_out,
            transcendentals=0,
            bytes_accessed=Np * K * dt_size + L_len * C_in * C_out * w_size
                           + Np * P * dt_size),
    )(x2, weight)

    if pad:
        out2 = out2[:N]
    return out2.reshape(N, M, C_out)


# ----------------------------------- main ----------------------------------------

if __name__ == "__main__":
    key = jax.random.PRNGKey(0)
    in_channels, out_channels = 32, 32
    L = (0, 2)                    # degrees 0..2 -> 1 + 3 + 5 = 9 orders
    N = 8                         # batch
    M = num_orders_in(L)
    L_len = L[1] + 1 - L[0]

    kx, kw = jax.random.split(key)
    x = jax.random.normal(kx, (N, M, in_channels), dtype=jnp.float32)
    # matches nn.Parameter(torch.randn(L_len, C_in, C_out) * 2 / sqrt(C_in + C_out))
    weight = (
        jax.random.normal(kw, (L_len, in_channels, out_channels), dtype=jnp.float32)
        * 2.0 / math.sqrt(in_channels + out_channels)
    )

    y = dw_linear(x, weight, L)
    y = jax.block_until_ready(y)

    # pure-JAX reference: y[n, m, :] = x[n, m, :] @ W[deg(m)]
    deg = jnp.asarray(
        [l - L[0] for l in range(L[0], L[1] + 1) for _ in range(2 * l + 1)],
        dtype=jnp.int32,
    )
    y_ref = jnp.einsum("nmi,mio->nmo", x, weight[deg])

    assert y.shape == (N, M, out_channels)
    assert jnp.allclose(y, y_ref, atol=1e-5, rtol=1e-5)
    print("KERNEL_OK")
</pallas_src>

<mosaic_0001>
module attributes {stable_mosaic.version = 11 : i64} {
  func.func @dw_linear_blockdiag_kernel(%arg0: i32, %arg1: memref<8x384xf32, #tpu.memory_space<vmem>>, %arg2: memref<384x384xf32, #tpu.memory_space<vmem>>, %arg3: memref<8x384xf32, #tpu.memory_space<vmem>>) attributes {dimension_semantics = [#tpu.dimension_semantics<parallel>], iteration_bounds = array<i64: 1>, scalar_prefetch = 0 : i64, scratch_operands = 0 : i64, tpu.core_type = #tpu.core_type<tc>, window_params = [{transform_indices = @transform_0, window_bounds = array<i64: 8, 384>}, {pipeline_mode = #tpu.pipeline_mode<synchronous>, transform_indices = @transform_1, window_bounds = array<i64: 384, 384>}, {transform_indices = @transform_2, window_bounds = array<i64: 8, 384>}]} {
    %c0 = arith.constant 0 : index
    %c0_0 = arith.constant 0 : index
    %0 = vector.load %arg1[%c0, %c0_0] : memref<8x384xf32, #tpu.memory_space<vmem>>, vector<8x384xf32>
    %c0_1 = arith.constant 0 : index
    %c0_2 = arith.constant 0 : index
    %1 = vector.load %arg2[%c0_1, %c0_2] : memref<384x384xf32, #tpu.memory_space<vmem>>, vector<384x384xf32>
    %cst = arith.constant dense<0.000000e+00> : vector<8x384xf32>
    %2 = tpu.matmul %0, %1, %cst {dimension_numbers = #tpu.dot_dimension_numbers<[1], [0], [0], [1], [0, 0, 1, 1], [], []>} : vector<8x384xf32>, vector<384x384xf32>, vector<8x384xf32> -> vector<8x384xf32>
    %c0_3 = arith.constant 0 : index
    %c0_4 = arith.constant 0 : index
    %3 = vector.load %arg3[%c0_3, %c0_4] : memref<8x384xf32, #tpu.memory_space<vmem>>, vector<8x384xf32>
    tpu.vector_store %arg3[%c0_3, %c0_4], %2 {strides = array<i32>} : memref<8x384xf32, #tpu.memory_space<vmem>>, vector<8x384xf32>,
    return
  }
  func.func @transform_0(%arg0: i32) -> (i32, i32) {
    %c0_i32 = arith.constant 0 : i32
    %c0_i32_0 = arith.constant 0 : i32
    return %arg0, %c0_i32 : i32, i32
  }
  func.func @transform_1(%arg0: i32) -> (i32, i32) {
    %c0_i32 = arith.constant 0 : i32
    %c0_i32_0 = arith.constant 0 : i32
    %c0_i32_1 = arith.constant 0 : i32
    return %c0_i32, %c0_i32_0 : i32, i32
  }
  func.func @transform_2(%arg0: i32) -> (i32, i32) {
    %c0_i32 = arith.constant 0 : i32
    %c0_i32_0 = arith.constant 0 : i32
    return %arg0, %c0_i32 : i32, i32
  }
}

</mosaic_0001>

<llo_original>
// kernel: tpu_custom_call.1
$region0: #{tpu_custom_call.1}
  #allocation0 [shape = 'u32[]', space=smem, size = 0x4, offset = 0x4, fixed_abs, tag = 'smem constant byte address 0x4 - core index']
  #allocation1 [shape = 'u32[144,128]{1,0:T(1,128)}', space=vmem, size = 0x12000, scoped, tag = 'internal scratch']
  %s0 = inlined_call_operand.hbm [shape: f32[8,384], index: 0, kind: input, shape index: {}]
  %s1 = inlined_call_operand.hbm [shape: f32[384,384], index: 1, kind: input, shape index: {}]
  %s2 = inlined_call_operand.hbm [shape: f32[8,384], index: 2, kind: output, shape index: {}]
  %s3 = sld [smem:[#allocation0]]
  $region26: #{tpu_custom_call.1} parent=0
    _
  %s5 = ssub.s32 1, %s3
  %s6 = scalar_select 0, %s5, %s3
  $region1: #{tpu_custom_call.1} parent=0
    #allocation2 [shape = 'u8[12288]{0}', space=vmem, size = 0x3000, scoped, tag = 'input window, operand 0, single buffered']
    #allocation3 [shape = 's32[1]{0}', space=sflag, size = 0x4, scoped, tag = 'scoped memory for tpu_custom_call.1']
    #allocation4 [shape = 's32[1]{0}', space=sflag, size = 0x4, scoped, tag = 'scoped memory for tpu_custom_call.1']
    #allocation5 [shape = 'u8[589824]{0}', space=vmem, size = 0x90000, scoped, tag = 'input window, operand 1, single buffered']
    #allocation6 [shape = 's32[1]{0}', space=sflag, size = 0x4, scoped, tag = 'scoped memory for tpu_custom_call.1']
    #allocation7 [shape = 'u8[12288]{0}', space=vmem, size = 0x3000, scoped, tag = 'output window, operand 0, single buffered']
    %7 = vsyncpa [#allocation3], 0
    %8 = vsyncpa [#allocation6], 0
    %9 = vsyncpa [#allocation4], 0
    // Predicated region
    $region2: #{tpu_custom_call.1} parent=1 // pred_check
      _
    $region3: #{tpu_custom_call.1} parent=1 // pred_check_branch
      %11 = sbr.rel (0) target = $region5
    $region4: #{tpu_custom_call.1} parent=1 // pred_region
      %s13 = ssub.s32 384, 384
      %14 = vsyncadd [#allocation3], %s13
      %s16 = sshll.u32 [#allocation2], 4
      %s17 = int_to_ptr.vmem [resolvable:$true] %s16
      %19 = dma.hbm_to_vmem [thread:$0]  %s0, 384, %s17, [#allocation3]
    $region5: #{tpu_custom_call.1} parent=1 // pred_fallthru
      _
    // Predicated region
    $region6: #{tpu_custom_call.1} parent=1 // pred_check
      _
    $region7: #{tpu_custom_call.1} parent=1 // pred_check_branch
      %21 = sbr.rel (0) target = $region9
    $region8: #{tpu_custom_call.1} parent=1 // pred_region
      %s23 = ssub.s32 18432, 18432
      %24 = vsyncadd [#allocation6], %s23
      %s25 = sshll.u32 [#allocation5], 4
      %s26 = int_to_ptr.vmem [resolvable:$true] %s25
      %31 = dma.hbm_to_vmem [thread:$0]  %s1, 18432, %s26, [#allocation6], 384, 384, 24
    $region9: #{tpu_custom_call.1} parent=1 // pred_fallthru
      _
    // Predicated region
    $region10: #{tpu_custom_call.1} parent=1 // pred_check
      _
    $region11: #{tpu_custom_call.1} parent=1 // pred_check_branch
      %33 = sbr.rel (0) target = $region13
    $region12: #{tpu_custom_call.1} parent=1 // pred_region
      %34 = dma.done [#allocation3], 384
    $region13: #{tpu_custom_call.1} parent=1 // pred_fallthru
      _
    // Predicated region
    $region14: #{tpu_custom_call.1} parent=1 // pred_check
      _
    $region15: #{tpu_custom_call.1} parent=1 // pred_check_branch
      %36 = sbr.rel (0) target = $region17
    $region16: #{tpu_custom_call.1} parent=1 // pred_region
      %37 = dma.done [#allocation6], 18432
    $region17: #{tpu_custom_call.1} parent=1 // pred_fallthru
      _
    %v38 = vld [vmem:[#allocation2] sm:$0xff]
    %v39 = vld [vmem:[#allocation2 + $0x8] sm:$0xff]
    %v40 = vld [vmem:[#allocation2 + $0x10] sm:$0xff]
    %v41 = vld [vmem:[#allocation5] sm:$0xff]
    %v42 = vld [vmem:[#allocation5 + $0x8] sm:$0xff]
    %v43 = vld [vmem:[#allocation5 + $0x10] sm:$0xff]
    %v44 = vld [vmem:[#allocation5 + $0x18] sm:$0xff]
    %v45 = vld [vmem:[#allocation5 + $0x20] sm:$0xff]
    %v46 = vld [vmem:[#allocation5 + $0x28] sm:$0xff]
    %v47 = vld [vmem:[#allocation5 + $0x30] sm:$0xff]
    %v48 = vld [vmem:[#allocation5 + $0x38] sm:$0xff]
    %v49 = vld [vmem:[#allocation5 + $0x40] sm:$0xff]
    %v50 = vld [vmem:[#allocation5 + $0x48] sm:$0xff]
    %v51 = vld [vmem:[#allocation5 + $0x50] sm:$0xff]
    %v52 = vld [vmem:[#allocation5 + $0x58] sm:$0xff]
    %v53 = vld [vmem:[#allocation5 + $0x60] sm:$0xff]
    %v54 = vld [vmem:[#allocation5 + $0x68] sm:$0xff]
    %v55 = vld [vmem:[#allocation5 + $0x70] sm:$0xff]
    %v56 = vld [vmem:[#allocation5 + $0x78] sm:$0xff]
    %v57 = vld [vmem:[#allocation5 + $0x80] sm:$0xff]
    %v58 = vld [vmem:[#allocation5 + $0x88] sm:$0xff]
    %v59 = vld [vmem:[#allocation5 + $0x90] sm:$0xff]
    %v60 = vld [vmem:[#allocation5 + $0x98] sm:$0xff]
    %v61 = vld [vmem:[#allocation5 + $0xa0] sm:$0xff]
    %v62 = vld [vmem:[#allocation5 + $0xa8] sm:$0xff]
    %v63 = vld [vmem:[#allocation5 + $0xb0] sm:$0xff]
    %v64 = vld [vmem:[#allocation5 + $0xb8] sm:$0xff]
    %v65 = vld [vmem:[#allocation5 + $0xc0] sm:$0xff]
    %v66 = vld [vmem:[#allocation5 + $0xc8] sm:$0xff]
    %v67 = vld [vmem:[#allocation5 + $0xd0] sm:$0xff]
    %v68 = vld [vmem:[#allocation5 + $0xd8] sm:$0xff]
    %v69 = vld [vmem:[#allocation5 + $0xe0] sm:$0xff]
    %v70 = vld [vmem:[#allocation5 + $0xe8] sm:$0xff]
    %v71 = vld [vmem:[#allocation5 + $0xf0] sm:$0xff]
    %v72 = vld [vmem:[#allocation5 + $0xf8] sm:$0xff]
    %v73 = vld [vmem:[#allocation5 + $0x100] sm:$0xff]
    %v74 = vld [vmem:[#allocation5 + $0x108] sm:$0xff]
    %v75 = vld [vmem:[#allocation5 + $0x110] sm:$0xff]
    %v76 = vld [vmem:[#allocation5 + $0x118] sm:$0xff]
    %v77 = vld [vmem:[#allocation5 + $0x120] sm:$0xff]
    %v78 = vld [vmem:[#allocation5 + $0x128] sm:$0xff]
    %v79 = vld [vmem:[#allocation5 + $0x130] sm:$0xff]
    %v80 = vld [vmem:[#allocation5 + $0x138] sm:$0xff]
    %v81 = vld [vmem:[#allocation5 + $0x140] sm:$0xff]
    %v82 = vld [vmem:[#allocation5 + $0x148] sm:$0xff]
    %v83 = vld [vmem:[#allocation5 + $0x150] sm:$0xff]
    %v84 = vld [vmem:[#allocation5 + $0x158] sm:$0xff]
    %v85 = vld [vmem:[#allocation5 + $0x160] sm:$0xff]
    %v86 = vld [vmem:[#allocation5 + $0x168] sm:$0xff]
    %v87 = vld [vmem:[#allocation5 + $0x170] sm:$0xff]
    %v88 = vld [vmem:[#allocation5 + $0x178] sm:$0xff]
    %v89 = vld [vmem:[#allocation5 + $0x180] sm:$0xff]
    %v90 = vld [vmem:[#allocation5 + $0x188] sm:$0xff]
    %v91 = vld [vmem:[#allocation5 + $0x190] sm:$0xff]
    %v92 = vld [vmem:[#allocation5 + $0x198] sm:$0xff]
    %v93 = vld [vmem:[#allocation5 + $0x1a0] sm:$0xff]
    %v94 = vld [vmem:[#allocation5 + $0x1a8] sm:$0xff]
    %v95 = vld [vmem:[#allocation5 + $0x1b0] sm:$0xff]
    %v96 = vld [vmem:[#allocation5 + $0x1b8] sm:$0xff]
    %v97 = vld [vmem:[#allocation5 + $0x1c0] sm:$0xff]
    %v98 = vld [vmem:[#allocation5 + $0x1c8] sm:$0xff]
    %v99 = vld [vmem:[#allocation5 + $0x1d0] sm:$0xff]
    %v100 = vld [vmem:[#allocation5 + $0x1d8] sm:$0xff]
    %v101 = vld [vmem:[#allocation5 + $0x1e0] sm:$0xff]
    %v102 = vld [vmem:[#allocation5 + $0x1e8] sm:$0xff]
    %v103 = vld [vmem:[#allocation5 + $0x1f0] sm:$0xff]
    %v104 = vld [vmem:[#allocation5 + $0x1f8] sm:$0xff]
    %v105 = vld [vmem:[#allocation5 + $0x200] sm:$0xff]
    %v106 = vld [vmem:[#allocation5 + $0x208] sm:$0xff]
    %v107 = vld [vmem:[#allocation5 + $0x210] sm:$0xff]
    %v108 = vld [vmem:[#allocation5 + $0x218] sm:$0xff]
    %v109 = vld [vmem:[#allocation5 + $0x220] sm:$0xff]
    %v110 = vld [vmem:[#allocation5 + $0x228] sm:$0xff]
    %v111 = vld [vmem:[#allocation5 + $0x230] sm:$0xff]
    %v112 = vld [vmem:[#allocation5 + $0x238] sm:$0xff]
    %v113 = vld [vmem:[#allocation5 + $0x240] sm:$0xff]
    %v114 = vld [vmem:[#allocation5 + $0x248] sm:$0xff]
    %v115 = vld [vmem:[#allocation5 + $0x250] sm:$0xff]
    %v116 = vld [vmem:[#allocation5 + $0x258] sm:$0xff]
    %v117 = vld [vmem:[#allocation5 + $0x260] sm:$0xff]
    %v118 = vld [vmem:[#allocation5 + $0x268] sm:$0xff]
    %v119 = vld [vmem:[#allocation5 + $0x270] sm:$0xff]
    %v120 = vld [vmem:[#allocation5 + $0x278] sm:$0xff]
    %v121 = vld [vmem:[#allocation5 + $0x280] sm:$0xff]
    %v122 = vld [vmem:[#allocation5 + $0x288] sm:$0xff]
    %v123 = vld [vmem:[#allocation5 + $0x290] sm:$0xff]
    %v124 = vld [vmem:[#allocation5 + $0x298] sm:$0xff]
    %v125 = vld [vmem:[#allocation5 + $0x2a0] sm:$0xff]
    %v126 = vld [vmem:[#allocation5 + $0x2a8] sm:$0xff]
    %v127 = vld [vmem:[#allocation5 + $0x2b0] sm:$0xff]
    %v128 = vld [vmem:[#allocation5 + $0x2b8] sm:$0xff]
    %v129 = vld [vmem:[#allocation5 + $0x2c0] sm:$0xff]
    %v130 = vld [vmem:[#allocation5 + $0x2c8] sm:$0xff]
    %v131 = vld [vmem:[#allocation5 + $0x2d0] sm:$0xff]
    %v132 = vld [vmem:[#allocation5 + $0x2d8] sm:$0xff]
    %v133 = vld [vmem:[#allocation5 + $0x2e0] sm:$0xff]
    %v134 = vld [vmem:[#allocation5 + $0x2e8] sm:$0xff]
    %v135 = vld [vmem:[#allocation5 + $0x2f0] sm:$0xff]
    %v136 = vld [vmem:[#allocation5 + $0x2f8] sm:$0xff]
    %v137 = vld [vmem:[#allocation5 + $0x300] sm:$0xff]
    %v138 = vld [vmem:[#allocation5 + $0x308] sm:$0xff]
    %v139 = vld [vmem:[#allocation5 + $0x310] sm:$0xff]
    %v140 = vld [vmem:[#allocation5 + $0x318] sm:$0xff]
    %v141 = vld [vmem:[#allocation5 + $0x320] sm:$0xff]
    %v142 = vld [vmem:[#allocation5 + $0x328] sm:$0xff]
    %v143 = vld [vmem:[#allocation5 + $0x330] sm:$0xff]
    %v144 = vld [vmem:[#allocation5 + $0x338] sm:$0xff]
    %v145 = vld [vmem:[#allocation5 + $0x340] sm:$0xff]
    %v146 = vld [vmem:[#allocation5 + $0x348] sm:$0xff]
    %v147 = vld [vmem:[#allocation5 + $0x350] sm:$0xff]
    %v148 = vld [vmem:[#allocation5 + $0x358] sm:$0xff]
    %v149 = vld [vmem:[#allocation5 + $0x360] sm:$0xff]
    %v150 = vld [vmem:[#allocation5 + $0x368] sm:$0xff]
    %v151 = vld [vmem:[#allocation5 + $0x370] sm:$0xff]
    %v152 = vld [vmem:[#allocation5 + $0x378] sm:$0xff]
    %v153 = vld [vmem:[#allocation5 + $0x380] sm:$0xff]
    %v154 = vld [vmem:[#allocation5 + $0x388] sm:$0xff]
    %v155 = vld [vmem:[#allocation5 + $0x390] sm:$0xff]
    %v156 = vld [vmem:[#allocation5 + $0x398] sm:$0xff]
    %v157 = vld [vmem:[#allocation5 + $0x3a0] sm:$0xff]
    %v158 = vld [vmem:[#allocation5 + $0x3a8] sm:$0xff]
    %v159 = vld [vmem:[#allocation5 + $0x3b0] sm:$0xff]
    %v160 = vld [vmem:[#allocation5 + $0x3b8] sm:$0xff]
    %v161 = vld [vmem:[#allocation5 + $0x3c0] sm:$0xff]
    %v162 = vld [vmem:[#allocation5 + $0x3c8] sm:$0xff]
    %v163 = vld [vmem:[#allocation5 + $0x3d0] sm:$0xff]
    %v164 = vld [vmem:[#allocation5 + $0x3d8] sm:$0xff]
    %v165 = vld [vmem:[#allocation5 + $0x3e0] sm:$0xff]
    %v166 = vld [vmem:[#allocation5 + $0x3e8] sm:$0xff]
    %v167 = vld [vmem:[#allocation5 + $0x3f0] sm:$0xff]
    %v168 = vld [vmem:[#allocation5 + $0x3f8] sm:$0xff]
    %v169 = vld [vmem:[#allocation5 + $0x400] sm:$0xff]
    %v170 = vld [vmem:[#allocation5 + $0x408] sm:$0xff]
    %v171 = vld [vmem:[#allocation5 + $0x410] sm:$0xff]
    %v172 = vld [vmem:[#allocation5 + $0x418] sm:$0xff]
    %v173 = vld [vmem:[#allocation5 + $0x420] sm:$0xff]
    %v174 = vld [vmem:[#allocation5 + $0x428] sm:$0xff]
    %v175 = vld [vmem:[#allocation5 + $0x430] sm:$0xff]
    %v176 = vld [vmem:[#allocation5 + $0x438] sm:$0xff]
    %v177 = vld [vmem:[#allocation5 + $0x440] sm:$0xff]
    %v178 = vld [vmem:[#allocation5 + $0x448] sm:$0xff]
    %v179 = vld [vmem:[#allocation5 + $0x450] sm:$0xff]
    %v180 = vld [vmem:[#allocation5 + $0x458] sm:$0xff]
    %v181 = vld [vmem:[#allocation5 + $0x460] sm:$0xff]
    %v182 = vld [vmem:[#allocation5 + $0x468] sm:$0xff]
    %v183 = vld [vmem:[#allocation5 + $0x470] sm:$0xff]
    %v184 = vld [vmem:[#allocation5 + $0x478] sm:$0xff]
    %185 = vmatprep.subr.mxu0 %v42
    %186 = vmatpush1.msra.mxu0 %v41
    %187 = vmatprep.subr.mxu0 %v45
    %188 = vmatpush1.msra.mxu0 %v44
    %189 = vmatprep.subr.mxu0 %v48
    %190 = vmatpush1.msra.mxu0 %v47
    %191 = vmatprep.subr.mxu0 %v51
    %192 = vmatpush1.msra.mxu0 %v50
    %193 = vmatprep.subr.mxu0 %v54
    %194 = vmatpush1.msra.mxu0 %v53
    %195 = vmatprep.subr.mxu0 %v57
    %196 = vmatpush1.msra.mxu0 %v56
    %197 = vmatprep.subr.mxu0 %v60
    %198 = vmatpush1.msra.mxu0 %v59
    %199 = vmatprep.subr.mxu0 %v63
    %200 = vmatpush1.msra.mxu0 %v62
    %201 = vmatprep.subr.mxu0 %v66
    %202 = vmatpush1.msra.mxu0 %v65
    %203 = vmatprep.subr.mxu0 %v69
    %204 = vmatpush1.msra.mxu0 %v68
    %205 = vmatprep.subr.mxu0 %v72
    %206 = vmatpush1.msra.mxu0 %v71
    %207 = vmatprep.subr.mxu0 %v75
    %208 = vmatpush1.msra.mxu0 %v74
    %209 = vmatprep.subr.mxu0 %v78
    %210 = vmatpush1.msra.mxu0 %v77
    %211 = vmatprep.subr.mxu0 %v81
    %212 = vmatpush1.msra.mxu0 %v80
    %213 = vmatprep.subr.mxu0 %v84
    %214 = vmatpush1.msra.mxu0 %v83
    %215 = vmatprep.subr.mxu0 %v87
    %216 = vmatpush1.msra.mxu0 %v86
    %217 = vmatprep.subr.mxu0 %v90
    %218 = vmatpush1.msra.mxu0 %v89
    %219 = vmatprep.subr.mxu0 %v93
    %220 = vmatpush1.msra.mxu0 %v92
    %221 = vmatprep.subr.mxu0 %v96
    %222 = vmatpush1.msra.mxu0 %v95
    %223 = vmatprep.subr.mxu0 %v99
    %224 = vmatpush1.msra.mxu0 %v98
    %225 = vmatprep.subr.mxu0 %v102
    %226 = vmatpush1.msra.mxu0 %v101
    %227 = vmatprep.subr.mxu0 %v105
    %228 = vmatpush1.msra.mxu0 %v104
    %229 = vmatprep.subr.mxu0 %v108
    %230 = vmatpush1.msra.mxu0 %v107
    %231 = vmatprep.subr.mxu0 %v111
    %232 = vmatpush1.msra.mxu0 %v110
    %233 = vmatprep.subr.mxu0 %v114
    %234 = vmatpush1.msra.mxu0 %v113
    %235 = vmatprep.subr.mxu0 %v117
    %236 = vmatpush1.msra.mxu0 %v116
    %237 = vmatprep.subr.mxu0 %v120
    %238 = vmatpush1.msra.mxu0 %v119
    %239 = vmatprep.subr.mxu0 %v123
    %240 = vmatpush1.msra.mxu0 %v122
    %241 = vmatprep.subr.mxu0 %v126
    %242 = vmatpush1.msra.mxu0 %v125
    %243 = vmatprep.subr.mxu0 %v129
    %244 = vmatpush1.msra.mxu0 %v128
    %245 = vmatprep.subr.mxu0 %v132
    %246 = vmatpush1.msra.mxu0 %v131
    %247 = vmatprep.subr.mxu0 %v135
    %248 = vmatpush1.msra.mxu0 %v134
    %249 = vmatprep.mubr.f32.mxu0 %v39
    %250 = vmatmul.mubr.f32.gmra.mrb[0].mxu0 %v38
    %v251 = vpop.f32.mrb[0].mxu0
    %v252 = vadd.f32 0.0, %v251
    %v253 = vpop.f32.mrb[0].mxu0
    %v254 = vadd.f32 0.0, %v253
    %255 = vdwg.mxu0
    %256 = vmatprep.subr.mxu0 %v138
    %257 = vmatpush1.msra.mxu0 %v137
    %258 = vmatprep.subr.mxu0 %v141
    %259 = vmatpush1.msra.mxu0 %v140
    %260 = vmatprep.subr.mxu0 %v144
    %261 = vmatpush1.msra.mxu0 %v143
    %262 = vmatprep.subr.mxu0 %v147
    %263 = vmatpush1.msra.mxu0 %v146
    %264 = vmatprep.subr.mxu0 %v150
    %265 = vmatpush1.msra.mxu0 %v149
    %266 = vmatprep.subr.mxu0 %v153
    %267 = vmatpush1.msra.mxu0 %v152
    %268 = vmatprep.subr.mxu0 %v156
    %269 = vmatpush1.msra.mxu0 %v155
    %270 = vmatprep.subr.mxu0 %v159
    %271 = vmatpush1.msra.mxu0 %v158
    %272 = vmatprep.subr.mxu0 %v162
    %273 = vmatpush1.msra.mxu0 %v161
    %274 = vmatprep.subr.mxu0 %v165
    %275 = vmatpush1.msra.mxu0 %v164
    %276 = vmatprep.subr.mxu0 %v168
    %277 = vmatpush1.msra.mxu0 %v167
    %278 = vmatprep.subr.mxu0 %v171
    %279 = vmatpush1.msra.mxu0 %v170
    %280 = vmatprep.subr.mxu0 %v174
    %281 = vmatpush1.msra.mxu0 %v173
    %282 = vmatprep.subr.mxu0 %v177
    %283 = vmatpush1.msra.mxu0 %v176
    %284 = vmatprep.subr.mxu0 %v180
    %285 = vmatpush1.msra.mxu0 %v179
    %286 = vmatprep.subr.mxu0 %v183
    %287 = vmatpush1.msra.mxu0 %v182
    %288 = vmatprep.subr.mxu0 0.0
    %289 = vmatpush1.msra.mxu0 0.0
    %290 = vmatprep.subr.mxu0 0.0
    %291 = vmatpush1.msra.mxu0 0.0
    %292 = vmatprep.subr.mxu0 0.0
    %293 = vmatpush1.msra.mxu0 0.0
    %294 = vmatprep.subr.mxu0 0.0
    %295 = vmatpush1.msra.mxu0 0.0
    %296 = vmatprep.subr.mxu0 0.0
    %297 = vmatpush1.msra.mxu0 0.0
    %298 = vmatprep.subr.mxu0 0.0
    %299 = vmatpush1.msra.mxu0 0.0
    %300 = vmatprep.subr.mxu0 0.0
    %301 = vmatpush1.msra.mxu0 0.0
    %302 = vmatprep.subr.mxu0 0.0
    %303 = vmatpush1.msra.mxu0 0.0
    %304 = vmatprep.subr.mxu0 0.0
    %305 = vmatpush1.msra.mxu0 0.0
    %306 = vmatprep.subr.mxu0 0.0
    %307 = vmatpush1.msra.mxu0 0.0
    %308 = vmatprep.subr.mxu0 0.0
    %309 = vmatpush1.msra.mxu0 0.0
    %310 = vmatprep.subr.mxu0 0.0
    %311 = vmatpush1.msra.mxu0 0.0
    %312 = vmatprep.subr.mxu0 0.0
    %313 = vmatpush1.msra.mxu0 0.0
    %314 = vmatprep.subr.mxu0 0.0
    %315 = vmatpush1.msra.mxu0 0.0
    %316 = vmatprep.subr.mxu0 0.0
    %317 = vmatpush1.msra.mxu0 0.0
    %318 = vmatprep.subr.mxu0 0.0
    %319 = vmatpush1.msra.mxu0 0.0
    %320 = vmatprep.mubr.f32.mxu0 0.0
    %321 = vmatmul.mubr.f32.gmra.mrb[0].mxu0 %v40
    %v322 = vpop.f32.mrb[0].mxu0
    %v323 = vadd.f32 %v252, %v322
    %v324 = vpop.f32.mrb[0].mxu0
    %v325 = vadd.f32 %v254, %v324
    %326 = vdwg.mxu0
    %327 = vmatprep.subr.mxu0 0.0
    %328 = vmatpush1.msra.mxu0 %v43
    %329 = vmatprep.subr.mxu0 0.0
    %330 = vmatpush1.msra.mxu0 %v46
    %331 = vmatprep.subr.mxu0 0.0
    %332 = vmatpush1.msra.mxu0 %v49
    %333 = vmatprep.subr.mxu0 0.0
    %334 = vmatpush1.msra.mxu0 %v52
    %335 = vmatprep.subr.mxu0 0.0
    %336 = vmatpush1.msra.mxu0 %v55
    %337 = vmatprep.subr.mxu0 0.0
    %338 = vmatpush1.msra.mxu0 %v58
    %339 = vmatprep.subr.mxu0 0.0
    %340 = vmatpush1.msra.mxu0 %v61
    %341 = vmatprep.subr.mxu0 0.0
    %342 = vmatpush1.msra.mxu0 %v64
    %343 = vmatprep.subr.mxu0 0.0
    %344 = vmatpush1.msra.mxu0 %v67
    %345 = vmatprep.subr.mxu0 0.0
    %346 = vmatpush1.msra.mxu0 %v70
    %347 = vmatprep.subr.mxu0 0.0
    %348 = vmatpush1.msra.mxu0 %v73
    %349 = vmatprep.subr.mxu0 0.0
    %350 = vmatpush1.msra.mxu0 %v76
    %351 = vmatprep.subr.mxu0 0.0
    %352 = vmatpush1.msra.mxu0 %v79
    %353 = vmatprep.subr.mxu0 0.0
    %354 = vmatpush1.msra.mxu0 %v82
    %355 = vmatprep.subr.mxu0 0.0
    %356 = vmatpush1.msra.mxu0 %v85
    %357 = vmatprep.subr.mxu0 0.0
    %358 = vmatpush1.msra.mxu0 %v88
    %359 = vmatprep.subr.mxu0 0.0
    %360 = vmatpush1.msra.mxu0 %v91
    %361 = vmatprep.subr.mxu0 0.0
    %362 = vmatpush1.msra.mxu0 %v94
    %363 = vmatprep.subr.mxu0 0.0
    %364 = vmatpush1.msra.mxu0 %v97
    %365 = vmatprep.subr.mxu0 0.0
    %366 = vmatpush1.msra.mxu0 %v100
    %367 = vmatprep.subr.mxu0 0.0
    %368 = vmatpush1.msra.mxu0 %v103
    %369 = vmatprep.subr.mxu0 0.0
    %370 = vmatpush1.msra.mxu0 %v106
    %371 = vmatprep.subr.mxu0 0.0
    %372 = vmatpush1.msra.mxu0 %v109
    %373 = vmatprep.subr.mxu0 0.0
    %374 = vmatpush1.msra.mxu0 %v112
    %375 = vmatprep.subr.mxu0 0.0
    %376 = vmatpush1.msra.mxu0 %v115
    %377 = vmatprep.subr.mxu0 0.0
    %378 = vmatpush1.msra.mxu0 %v118
    %379 = vmatprep.subr.mxu0 0.0
    %380 = vmatpush1.msra.mxu0 %v121
    %381 = vmatprep.subr.mxu0 0.0
    %382 = vmatpush1.msra.mxu0 %v124
    %383 = vmatprep.subr.mxu0 0.0
    %384 = vmatpush1.msra.mxu0 %v127
    %385 = vmatprep.subr.mxu0 0.0
    %386 = vmatpush1.msra.mxu0 %v130
    %387 = vmatprep.subr.mxu0 0.0
    %388 = vmatpush1.msra.mxu0 %v133
    %389 = vmatprep.subr.mxu0 0.0
    %390 = vmatpush1.msra.mxu0 %v136
    %391 = vmatprep.mubr.f32.mxu0 %v39
    %392 = vmatmul.mubr.f32.gmra.mrb[0].mxu0 %v38
    %v393 = vpop.f32.mrb[0].mxu0
    %v394 = vadd.f32 0.0, %v393
    %v395 = vpop.f32.mrb[0].mxu0
    %396 = vdwg.mxu0
    %397 = vmatprep.subr.mxu0 0.0
    %398 = vmatpush1.msra.mxu0 %v139
    %399 = vmatprep.subr.mxu0 0.0
    %400 = vmatpush1.msra.mxu0 %v142
    %401 = vmatprep.subr.mxu0 0.0
    %402 = vmatpush1.msra.mxu0 %v145
    %403 = vmatprep.subr.mxu0 0.0
    %404 = vmatpush1.msra.mxu0 %v148
    %405 = vmatprep.subr.mxu0 0.0
    %406 = vmatpush1.msra.mxu0 %v151
    %407 = vmatprep.subr.mxu0 0.0
    %408 = vmatpush1.msra.mxu0 %v154
    %409 = vmatprep.subr.mxu0 0.0
    %410 = vmatpush1.msra.mxu0 %v157
    %411 = vmatprep.subr.mxu0 0.0
    %412 = vmatpush1.msra.mxu0 %v160
    %413 = vmatprep.subr.mxu0 0.0
    %414 = vmatpush1.msra.mxu0 %v163
    %415 = vmatprep.subr.mxu0 0.0
    %416 = vmatpush1.msra.mxu0 %v166
    %417 = vmatprep.subr.mxu0 0.0
    %418 = vmatpush1.msra.mxu0 %v169
    %419 = vmatprep.subr.mxu0 0.0
    %420 = vmatpush1.msra.mxu0 %v172
    %421 = vmatprep.subr.mxu0 0.0
    %422 = vmatpush1.msra.mxu0 %v175
    %423 = vmatprep.subr.mxu0 0.0
    %424 = vmatpush1.msra.mxu0 %v178
    %425 = vmatprep.subr.mxu0 0.0
    %426 = vmatpush1.msra.mxu0 %v181
    %427 = vmatprep.subr.mxu0 0.0
    %428 = vmatpush1.msra.mxu0 %v184
    %429 = vmatprep.subr.mxu0 0.0
    %430 = vmatpush1.msra.mxu0 0.0
    %431 = vmatprep.subr.mxu0 0.0
    %432 = vmatpush1.msra.mxu0 0.0
    %433 = vmatprep.subr.mxu0 0.0
    %434 = vmatpush1.msra.mxu0 0.0
    %435 = vmatprep.subr.mxu0 0.0
    %436 = vmatpush1.msra.mxu0 0.0
    %437 = vmatprep.subr.mxu0 0.0
    %438 = vmatpush1.msra.mxu0 0.0
    %439 = vmatprep.subr.mxu0 0.0
    %440 = vmatpush1.msra.mxu0 0.0
    %441 = vmatprep.subr.mxu0 0.0
    %442 = vmatpush1.msra.mxu0 0.0
    %443 = vmatprep.subr.mxu0 0.0
    %444 = vmatpush1.msra.mxu0 0.0
    %445 = vmatprep.subr.mxu0 0.0
    %446 = vmatpush1.msra.mxu0 0.0
    %447 = vmatprep.subr.mxu0 0.0
    %448 = vmatpush1.msra.mxu0 0.0
    %449 = vmatprep.subr.mxu0 0.0
    %450 = vmatpush1.msra.mxu0 0.0
    %451 = vmatprep.subr.mxu0 0.0
    %452 = vmatpush1.msra.mxu0 0.0
    %453 = vmatprep.subr.mxu0 0.0
    %454 = vmatpush1.msra.mxu0 0.0
    %455 = vmatprep.subr.mxu0 0.0
    %456 = vmatpush1.msra.mxu0 0.0
    %457 = vmatprep.subr.mxu0 0.0
    %458 = vmatpush1.msra.mxu0 0.0
    %459 = vmatprep.subr.mxu0 0.0
    %460 = vmatpush1.msra.mxu0 0.0
    %461 = vmatprep.mubr.f32.mxu0 0.0
    %462 = vmatmul.mubr.f32.gmra.mrb[0].mxu0 %v40
    %v463 = vpop.f32.mrb[0].mxu0
    %v464 = vadd.f32 %v394, %v463
    %v465 = vpop.f32.mrb[0].mxu0
    %466 = vdwg.mxu0
    %467 = vst [vmem:[#allocation7] sm:$0xff] %v323
    %468 = vst [vmem:[#allocation7 + $0x8] sm:$0xff] %v325
    %469 = vst [vmem:[#allocation7 + $0x10] sm:$0xff] %v464
    // Predicated region
    $region18: #{tpu_custom_call.1} parent=1 // pred_check
      _
    $region19: #{tpu_custom_call.1} parent=1 // pred_check_branch
      %471 = sbr.rel (0) target = $region21
    $region20: #{tpu_custom_call.1} parent=1 // pred_region
      %s473 = ssub.s32 384, 384
      %474 = vsyncadd [#allocation4], %s473
      %s476 = sshll.u32 [#allocation7], 4
      %s477 = int_to_ptr.vmem [resolvable:$true] %s476
      %479 = dma.vmem_to_hbm [thread:$0]  %s477, 384, %s2, [#allocation4]
    $region21: #{tpu_custom_call.1} parent=1 // pred_fallthru
      _
    // Predicated region
    $region22: #{tpu_custom_call.1} parent=1 // pred_check
      _
    $region23: #{tpu_custom_call.1} parent=1 // pred_check_branch
      %481 = sbr.rel (0) target = $region25
    $region24: #{tpu_custom_call.1} parent=1 // pred_region
      %482 = dma.done [#allocation4], 384
    $region25: #{tpu_custom_call.1} parent=1 // pred_fallthru
      _
    %483 = vsyncpa [#allocation3], 1
    %484 = vsyncpa [#allocation6], 1
    %485 = vsyncpa [#allocation4], 1

</llo_original>
